<compile_context>
chip_gen: v7x
topology: tpu7x:2x2x1
jax: 0.10.0
libtpu: 0.0.40
codegen_flags: <defaults>
</compile_context>

<pallas_src>
import functools

import jax
import jax.numpy as jnp
from jax.experimental import pallas as pl
from jax.experimental.pallas import tpu as pltpu

_NEG_FILL = -10.0      # value masked_fill_ writes on the diagonal of l_neg
_MASK_VAL = -1e30      # logit value assigned to padded key columns


def _patch_nce_kernel(q_ref, k_ref, loss_ref, m_sc, l_sc, pos_sc, *,
                      inv_t, neg_scaled, p_valid, p_pad, use_bf16_exp):
    """One (TB, TQ) query tile x one (TB, TK==TQ) key tile (online logsumexp).

    q_ref:    (TB, TQ, D)  native dtype, resident across the kt axis
    k_ref:    (TB, TQ, D)  native dtype, streamed along the kt axis
    loss_ref: (TB, TQ)     f32, written only at kt == last
    m_sc/l_sc/pos_sc: (TB, TQ) f32 running max / sum-exp / positive logit
    """
    qt = pl.program_id(1)
    kt = pl.program_id(2)
    nk = pl.num_programs(2)
    TQ = q_ref.shape[1]

    @pl.when(kt == 0)
    def _init():
        # Fold the masked-diagonal term exp(-10/T) into the accumulators:
        # m = -10/T, l = exp(-10/T - m) = 1.
        m_sc[...] = jnp.full(m_sc.shape, neg_scaled, dtype=m_sc.dtype)
        l_sc[...] = jnp.ones(l_sc.shape, dtype=l_sc.dtype)

    q = q_ref[...]
    # Fold 1/T into q (TB*TQ*D mults) instead of the (TB,TQ,TK) logit tile.
    if q.dtype == jnp.float32:
        q = q * inv_t
    else:
        q = (q.astype(jnp.float32) * inv_t).astype(q.dtype)
    k = k_ref[...]

    # MXU: all-pairs logits for this tile; operands in native dtype, f32 acc.
    s = jnp.einsum("bqd,bkd->bqk", q, k,
                   preferred_element_type=jnp.float32)      # (TB, TQ, TK)

    if p_pad != p_valid:
        # Padded key columns (only present in the last kt block) must not
        # contribute to the logsumexp.
        col = kt * TQ + jax.lax.broadcasted_iota(jnp.int32, s.shape, 2)
        s = jnp.where(col < p_valid, s, _MASK_VAL)

    # Positive logits: this kt block holds the keys paired with this q tile
    # (TK == TQ, so block kt == qt covers rows [qt*TQ, qt*TQ + TQ)).
    @pl.when(kt == qt)
    def _pos():
        pos_sc[...] = jnp.sum(q * k, axis=-1, dtype=jnp.float32)

    # Online softmax / logsumexp update.
    m_prev = m_sc[...]
    m_new = jnp.maximum(m_prev, jnp.max(s, axis=-1))
    shifted = s - m_new[..., None]
    if use_bf16_exp:     # bf16 EUP exp on v6e/v7x; exp is the binding unit
        p_sum = jnp.sum(jnp.exp(shifted.astype(jnp.bfloat16)),
                        axis=-1, dtype=jnp.float32)
    else:
        p_sum = jnp.sum(jnp.exp(shifted), axis=-1)
    l_sc[...] = jnp.exp(m_prev - m_new) * l_sc[...] + p_sum
    m_sc[...] = m_new

    @pl.when(kt == nk - 1)
    def _finalize():
        loss_ref[...] = m_sc[...] + jnp.log(l_sc[...]) - pos_sc[...]


def _vmem_budget_bytes():
    """~85% of the chip's per-core VMEM; v7x-safe fallback if unavailable."""
    try:
        cap = int(pltpu.get_tpu_info().vmem_capacity_bytes)
    except Exception:
        cap = 64 << 20           # v7x has 64 MiB/TC; v5e/v6e have 128 MiB
    return int(cap * 0.85)


def _pick_tiles(batch_size, npatches, vmem_budget):
    """Choose (TB, TQ, P_pad) with the f32 logit tile bounded by the budget."""
    TB = 8 if batch_size % 8 == 0 else batch_size
    n_bt = batch_size // TB
    if npatches <= 128:
        TQ = -(-npatches // 8) * 8             # pad to a sublane multiple
        return TB, TQ, TQ
    # Bound logits + exp temp (~2x TB*TQ^2*4 B) to ~1/4 of the VMEM budget.
    logit_budget = max(vmem_budget // 4, 4 << 20)
    cands = [c for c in (512, 256, 128) if 2 * TB * c * c * 4 <= logit_budget]
    if not cands:
        cands = [128]

    def score(c):
        p_pad = -(-npatches // c) * c
        need_split = (n_bt == 1)               # keep both v7x TCs busy
        return ((0 if (not need_split or p_pad // c >= 2) else 1), p_pad, -c)

    TQ = min(cands, key=score)
    return TB, TQ, -(-npatches // TQ) * TQ


def patch_nce_loss(feat_q, feat_k, batch_size, T=0.07):
    """Pallas implementation of PatchNCELoss.forward (shuffle_y=True path)."""
    B, D = feat_q.shape
    assert B % batch_size == 0, "batchSize must be divisible by batch_size"
    P = B // batch_size                        # npatches
    feat_k = jax.lax.stop_gradient(feat_k)     # mirrors feat_k.detach()

    q = feat_q.reshape(batch_size, P, D)
    k = feat_k.reshape(batch_size, P, D)

    budget = _vmem_budget_bytes()
    TB, TQ, P_pad = _pick_tiles(batch_size, P, budget)
    if P_pad != P:
        pad = P_pad - P
        q = jnp.pad(q, ((0, 0), (0, pad), (0, 0)))
        k = jnp.pad(k, ((0, 0), (0, pad), (0, 0)))
    grid = (batch_size // TB, P_pad // TQ, P_pad // TQ)

    # VMEM request derived from the actual tile footprint, capped by the same
    # per-chip budget the tile picker used.
    itemsize = jnp.dtype(q.dtype).itemsize
    qk_blk = TB * TQ * D * itemsize            # one q / k block
    o_blk = TB * TQ * 4                        # output / scratch block
    logit = TB * TQ * TQ * 4                   # f32 logit tile
    footprint = 2 * (2 * qk_blk + o_blk) + 3 * o_blk + 3 * logit + (4 << 20)
    vmem_limit = int(min(budget, max(32 << 20, footprint)))

    kern = functools.partial(
        _patch_nce_kernel,
        inv_t=float(1.0 / T),
        neg_scaled=float(_NEG_FILL / T),
        p_valid=P, p_pad=P_pad,
        use_bf16_exp=bool(q.dtype == jnp.bfloat16),
    )
    out = pl.pallas_call(
        kern,
        out_shape=jax.ShapeDtypeStruct((batch_size, P_pad), jnp.float32),
        grid=grid,
        in_specs=[
            pl.BlockSpec((TB, TQ, D), lambda bt, qt, kt: (bt, qt, 0)),
            pl.BlockSpec((TB, TQ, D), lambda bt, qt, kt: (bt, kt, 0)),
        ],
        out_specs=pl.BlockSpec((TB, TQ), lambda bt, qt, kt: (bt, qt)),
        scratch_shapes=[pltpu.VMEM((TB, TQ), jnp.float32)] * 3,
        compiler_params=pltpu.CompilerParams(
            dimension_semantics=("parallel", "parallel", "arbitrary"),
            vmem_limit_bytes=vmem_limit,
        ),
    )(q, k)
    if P_pad != P:
        out = out[:, :P]
    return out.reshape(B)


def _reference(feat_q, feat_k, batch_size, T=0.07):
    """Pure-JAX (f32) reference mirroring the PyTorch module, for validation."""
    B, D = feat_q.shape
    P = B // batch_size
    fq = feat_q.astype(jnp.float32)
    fk = feat_k.astype(jnp.float32)
    l_pos = jnp.sum(fq * fk, axis=1, keepdims=True)                   # (B, 1)
    q = fq.reshape(batch_size, P, D)
    k = fk.reshape(batch_size, P, D)
    l_neg = jnp.einsum("bpd,bqd->bpq", q, k)                          # (bs,P,P)
    eye = jnp.eye(P, dtype=bool)[None]
    l_neg = jnp.where(eye, _NEG_FILL, l_neg).reshape(B, P)
    out = jnp.concatenate([l_pos, l_neg], axis=1) / T                 # (B,P+1)
    return jax.nn.logsumexp(out, axis=1) - out[:, 0]                  # CE, tgt 0


if __name__ == "__main__":
    # TODO(synk): shuffle_y=False branch (randperm-shuffled CE) is not
    # implemented; with the module default shuffle_y=True, `idx` is dead code.

    def _run(batch_size, npatches, dim, dtype, normalize, key):
        B = batch_size * npatches
        kq, kk = jax.random.split(key)
        fq = jax.random.normal(kq, (B, dim), dtype=jnp.float32)
        fk = jax.random.normal(kk, (B, dim), dtype=jnp.float32)
        if normalize:  # PatchNCE features are L2-normalized in practice
            fq = fq / jnp.linalg.norm(fq, axis=1, keepdims=True)
            fk = fk / jnp.linalg.norm(fk, axis=1, keepdims=True)
        fq = fq.astype(dtype)
        fk = fk.astype(dtype)
        loss = jax.block_until_ready(
            patch_nce_loss(fq, fk, batch_size, T=0.07))
        ref = _reference(fq, fk, batch_size, T=0.07)
        assert loss.shape == (B,)
        assert bool(jnp.all(jnp.isfinite(loss)))
        return loss, ref

    key = jax.random.PRNGKey(0)
    k1, k2, k3, k4 = jax.random.split(key, 4)

    # Small config matching the module's flattened (batchSize, dim) inputs.
    loss, ref = _run(2, 8, 32, jnp.float32, False, k1)
    assert jnp.allclose(loss, ref, atol=5e-3, rtol=1e-4), (loss, ref)

    # Padded multi-block path (P=300 -> TQ=128, P_pad=384, masked tail).
    loss, ref = _run(2, 300, 64, jnp.float32, True, k2)
    assert jnp.allclose(loss, ref, atol=2e-3, rtol=1e-3), (loss, ref)

    # Larger tile path (P=1024 -> TQ=512, 2x2 query/key blocks, no padding).
    loss, ref = _run(2, 1024, 128, jnp.float32, True, k3)
    assert jnp.allclose(loss, ref, atol=2e-3, rtol=1e-3), (loss, ref)

    # bf16 inputs exercise bf16 MXU operands + bf16 exp (loose tolerance).
    loss, ref = _run(2, 256, 64, jnp.bfloat16, True, k4)
    assert float(jnp.max(jnp.abs(loss - ref))) < 0.5, (loss, ref)

    print("KERNEL_OK")
</pallas_src>

<mosaic_0001>
module attributes {stable_mosaic.version = 11 : i64} {
  func.func @_patch_nce_kernel(%arg0: i32, %arg1: i32, %arg2: i32, %arg3: memref<2x8x32xf32, #tpu.memory_space<vmem>>, %arg4: memref<2x8x32xf32, #tpu.memory_space<vmem>>, %arg5: memref<2x8xf32, #tpu.memory_space<vmem>>, %arg6: memref<2x8xf32, #tpu.memory_space<vmem>>, %arg7: memref<2x8xf32, #tpu.memory_space<vmem>>, %arg8: memref<2x8xf32, #tpu.memory_space<vmem>>) attributes {dimension_semantics = [#tpu.dimension_semantics<parallel>, #tpu.dimension_semantics<parallel>, #tpu.dimension_semantics<arbitrary>], iteration_bounds = array<i64: 1, 1, 1>, scalar_prefetch = 0 : i64, scratch_operands = 3 : i64, tpu.core_type = #tpu.core_type<tc>, window_params = [{transform_indices = @transform_0, window_bounds = array<i64: 2, 8, 32>}, {transform_indices = @transform_1, window_bounds = array<i64: 2, 8, 32>}, {transform_indices = @transform_2, window_bounds = array<i64: 2, 8>}]} {
    %c0_i32 = arith.constant 0 : i32
    %0 = arith.cmpi eq, %arg2, %c0_i32 : i32
    %1 = arith.extui %0 : i1 to i32
    %c0_i32_0 = arith.constant 0 : i32
    %2 = arith.cmpi ne, %1, %c0_i32_0 : i32
    scf.if %2 {
      %cst_20 = arith.constant -142.857147 : f32
      %29 = vector.broadcast %cst_20 : f32 to vector<2x8xf32>
      %c0_21 = arith.constant 0 : index
      %c0_22 = arith.constant 0 : index
      %30 = vector.load %arg6[%c0_21, %c0_22] : memref<2x8xf32, #tpu.memory_space<vmem>>, vector<2x8xf32>
      tpu.vector_store %arg6[%c0_21, %c0_22], %29 {strides = array<i32>} : memref<2x8xf32, #tpu.memory_space<vmem>>, vector<2x8xf32>,
      %cst_23 = arith.constant 1.000000e+00 : f32
      %31 = vector.broadcast %cst_23 : f32 to vector<2x8xf32>
      %c0_24 = arith.constant 0 : index
      %c0_25 = arith.constant 0 : index
      %32 = vector.load %arg7[%c0_24, %c0_25] : memref<2x8xf32, #tpu.memory_space<vmem>>, vector<2x8xf32>
      tpu.vector_store %arg7[%c0_24, %c0_25], %31 {strides = array<i32>} : memref<2x8xf32, #tpu.memory_space<vmem>>, vector<2x8xf32>,
    } else {
    }
    %c0 = arith.constant 0 : index
    %c0_1 = arith.constant 0 : index
    %c0_2 = arith.constant 0 : index
    %3 = vector.load %arg3[%c0, %c0_1, %c0_2] : memref<2x8x32xf32, #tpu.memory_space<vmem>>, vector<2x8x32xf32>
    %cst = arith.constant 14.2857141 : f32
    %4 = vector.broadcast %cst : f32 to vector<2x8x32xf32>
    %5 = arith.mulf %3, %4 : vector<2x8x32xf32>
    %c0_3 = arith.constant 0 : index
    %c0_4 = arith.constant 0 : index
    %c0_5 = arith.constant 0 : index
    %6 = vector.load %arg4[%c0_3, %c0_4, %c0_5] : memref<2x8x32xf32, #tpu.memory_space<vmem>>, vector<2x8x32xf32>
    "tpu.trace_start"() <{level = 10 : i32, message = "bqd,bkd->bqk"}> : () -> ()
    %cst_6 = arith.constant dense<0.000000e+00> : vector<2x8x8xf32>
    %7 = tpu.matmul %5, %6, %cst_6 {dimension_numbers = #tpu.dot_dimension_numbers<[2], [2], [1], [1], [0, 0, 0, 1, 1, 1], [0], [0]>} : vector<2x8x32xf32>, vector<2x8x32xf32>, vector<2x8x8xf32> -> vector<2x8x8xf32>
    "tpu.trace_stop"() : () -> ()
    %8 = arith.cmpi eq, %arg2, %arg1 : i32
    %9 = arith.extui %8 : i1 to i32
    %c0_i32_7 = arith.constant 0 : i32
    %10 = arith.cmpi ne, %9, %c0_i32_7 : i32
    scf.if %10 {
      %29 = arith.mulf %5, %6 : vector<2x8x32xf32>
      %cst_20 = arith.constant dense<0.000000e+00> : vector<2x8xf32>
      %30 = vector.multi_reduction <add>, %29, %cst_20 [2] : vector<2x8x32xf32> to vector<2x8xf32>
      %c0_21 = arith.constant 0 : index
      %c0_22 = arith.constant 0 : index
      %31 = vector.load %arg8[%c0_21, %c0_22] : memref<2x8xf32, #tpu.memory_space<vmem>>, vector<2x8xf32>
      tpu.vector_store %arg8[%c0_21, %c0_22], %30 {strides = array<i32>} : memref<2x8xf32, #tpu.memory_space<vmem>>, vector<2x8xf32>,
    } else {
    }
    %c0_8 = arith.constant 0 : index
    %c0_9 = arith.constant 0 : index
    %11 = vector.load %arg6[%c0_8, %c0_9] : memref<2x8xf32, #tpu.memory_space<vmem>>, vector<2x8xf32>
    %cst_10 = arith.constant dense<0xFF800000> : vector<2x8xf32>
    %12 = vector.multi_reduction <maximumf>, %7, %cst_10 [2] : vector<2x8x8xf32> to vector<2x8xf32>
    %13 = arith.maximumf %11, %12 : vector<2x8xf32>
    %14 = vector.shape_cast %13 : vector<2x8xf32> to vector<2x8x1xf32>
    %15 = vector.broadcast %14 : vector<2x8x1xf32> to vector<2x8x8xf32>
    %16 = arith.subf %7, %15 : vector<2x8x8xf32>
    %17 = math.exp %16 : vector<2x8x8xf32>
    %cst_11 = arith.constant dense<0.000000e+00> : vector<2x8xf32>
    %18 = vector.multi_reduction <add>, %17, %cst_11 [2] : vector<2x8x8xf32> to vector<2x8xf32>
    %19 = arith.subf %11, %13 : vector<2x8xf32>
    %20 = math.exp %19 : vector<2x8xf32>
    %c0_12 = arith.constant 0 : index
    %c0_13 = arith.constant 0 : index
    %21 = vector.load %arg7[%c0_12, %c0_13] : memref<2x8xf32, #tpu.memory_space<vmem>>, vector<2x8xf32>
    %22 = arith.mulf %20, %21 : vector<2x8xf32>
    %23 = arith.addf %22, %18 : vector<2x8xf32>
    %c0_14 = arith.constant 0 : index
    %c0_15 = arith.constant 0 : index
    %24 = vector.load %arg7[%c0_14, %c0_15] : memref<2x8xf32, #tpu.memory_space<vmem>>, vector<2x8xf32>
    tpu.vector_store %arg7[%c0_14, %c0_15], %23 {strides = array<i32>} : memref<2x8xf32, #tpu.memory_space<vmem>>, vector<2x8xf32>,
    %c0_16 = arith.constant 0 : index
    %c0_17 = arith.constant 0 : index
    %25 = vector.load %arg6[%c0_16, %c0_17] : memref<2x8xf32, #tpu.memory_space<vmem>>, vector<2x8xf32>
    tpu.vector_store %arg6[%c0_16, %c0_17], %13 {strides = array<i32>} : memref<2x8xf32, #tpu.memory_space<vmem>>, vector<2x8xf32>,
    %c0_i32_18 = arith.constant 0 : i32
    %26 = arith.cmpi eq, %arg2, %c0_i32_18 : i32
    %27 = arith.extui %26 : i1 to i32
    %c0_i32_19 = arith.constant 0 : i32
    %28 = arith.cmpi ne, %27, %c0_i32_19 : i32
    scf.if %28 {
      %c0_20 = arith.constant 0 : index
      %c0_21 = arith.constant 0 : index
      %29 = vector.load %arg6[%c0_20, %c0_21] : memref<2x8xf32, #tpu.memory_space<vmem>>, vector<2x8xf32>
      %c0_22 = arith.constant 0 : index
      %c0_23 = arith.constant 0 : index
      %30 = vector.load %arg7[%c0_22, %c0_23] : memref<2x8xf32, #tpu.memory_space<vmem>>, vector<2x8xf32>
      %31 = math.log %30 : vector<2x8xf32>
      %32 = arith.addf %29, %31 : vector<2x8xf32>
      %c0_24 = arith.constant 0 : index
      %c0_25 = arith.constant 0 : index
      %33 = vector.load %arg8[%c0_24, %c0_25] : memref<2x8xf32, #tpu.memory_space<vmem>>, vector<2x8xf32>
      %34 = arith.subf %32, %33 : vector<2x8xf32>
      %c0_26 = arith.constant 0 : index
      %c0_27 = arith.constant 0 : index
      %35 = vector.load %arg5[%c0_26, %c0_27] : memref<2x8xf32, #tpu.memory_space<vmem>>, vector<2x8xf32>
      tpu.vector_store %arg5[%c0_26, %c0_27], %34 {strides = array<i32>} : memref<2x8xf32, #tpu.memory_space<vmem>>, vector<2x8xf32>,
    } else {
    }
    return
  }
  func.func @transform_0(%arg0: i32, %arg1: i32, %arg2: i32) -> (i32, i32, i32) {
    %c0_i32 = arith.constant 0 : i32
    %c0_i32_0 = arith.constant 0 : i32
    return %arg0, %arg1, %c0_i32 : i32, i32, i32
  }
  func.func @transform_1(%arg0: i32, %arg1: i32, %arg2: i32) -> (i32, i32, i32) {
    %c0_i32 = arith.constant 0 : i32
    %c0_i32_0 = arith.constant 0 : i32
    return %arg0, %arg2, %c0_i32 : i32, i32, i32
  }
  func.func @transform_2(%arg0: i32, %arg1: i32, %arg2: i32) -> (i32, i32) {
    %c0_i32 = arith.constant 0 : i32
    return %arg0, %arg1 : i32, i32
  }
}

</mosaic_0001>

<llo_original>
// kernel: tpu_custom_call.1
$region0: #{tpu_custom_call.1}
  #allocation0 [shape = 'u32[]', space=smem, size = 0x4, offset = 0x4, fixed_abs, tag = 'smem constant byte address 0x4 - core index']
  #allocation1 [shape = 'u32[144,128]{1,0:T(1,128)}', space=vmem, size = 0x12000, scoped, tag = 'internal scratch']
  #allocation2 [shape = 'f32[2,8]{1,0:T(2,128)}', space=vmem, size = 0x400, scoped, tag = 'scratch operand']
  #allocation3 [shape = 'f32[2,8]{1,0:T(2,128)}', space=vmem, size = 0x400, scoped, tag = 'scratch operand']
  #allocation4 [shape = 'f32[2,8]{1,0:T(2,128)}', space=vmem, size = 0x400, scoped, tag = 'scratch operand']
  %s0 = inlined_call_operand.hbm [shape: f32[2,8,32], index: 0, kind: input, shape index: {}]
  %s1 = inlined_call_operand.hbm [shape: f32[2,8,32], index: 1, kind: input, shape index: {}]
  %s2 = inlined_call_operand.hbm [shape: f32[2,8], index: 2, kind: output, shape index: {}]
  %s3 = sld [smem:[#allocation0]]
  $region38: #{tpu_custom_call.1} parent=0
    _
  %s5 = ssub.s32 1, %s3
  %s6 = scalar_select 0, %s5, %s3
  $region1: #{tpu_custom_call.1} parent=0
    #allocation5 [shape = 'u8[8192]{0}', space=vmem, size = 0x2000, scoped, tag = 'input window, operand 0, single buffered']
    #allocation6 [shape = 's32[1]{0}', space=sflag, size = 0x4, scoped, tag = 'scoped memory for tpu_custom_call.1']
    #allocation7 [shape = 's32[1]{0}', space=sflag, size = 0x4, scoped, tag = 'scoped memory for tpu_custom_call.1']
    #allocation8 [shape = 'u8[8192]{0}', space=vmem, size = 0x2000, scoped, tag = 'input window, operand 1, single buffered']
    #allocation9 [shape = 's32[1]{0}', space=sflag, size = 0x4, scoped, tag = 'scoped memory for tpu_custom_call.1']
    #allocation10 [shape = 'u8[1024]{0}', space=vmem, size = 0x400, scoped, tag = 'output window, operand 0, single buffered']
    %7 = vsyncpa [#allocation6], 0
    %8 = vsyncpa [#allocation9], 0
    %9 = vsyncpa [#allocation7], 0
    // Predicated region
    $region2: #{tpu_custom_call.1} parent=1 // pred_check
      _
    $region3: #{tpu_custom_call.1} parent=1 // pred_check_branch
      %11 = sbr.rel (0) target = $region5
    $region4: #{tpu_custom_call.1} parent=1 // pred_region
      %s13 = ssub.s32 256, 256
      %14 = vsyncadd [#allocation6], %s13
      %s15 = sshll.u32 [#allocation5], 4
      %s16 = int_to_ptr.vmem [resolvable:$true] %s15
      %21 = dma.hbm_to_vmem [thread:$0]  %s0, 256, %s16, [#allocation6], 128, 128, 8
    $region5: #{tpu_custom_call.1} parent=1 // pred_fallthru
      _
    // Predicated region
    $region6: #{tpu_custom_call.1} parent=1 // pred_check
      _
    $region7: #{tpu_custom_call.1} parent=1 // pred_check_branch
      %23 = sbr.rel (0) target = $region9
    $region8: #{tpu_custom_call.1} parent=1 // pred_region
      %s25 = ssub.s32 256, 256
      %26 = vsyncadd [#allocation9], %s25
      %s27 = sshll.u32 [#allocation8], 4
      %s28 = int_to_ptr.vmem [resolvable:$true] %s27
      %33 = dma.hbm_to_vmem [thread:$0]  %s1, 256, %s28, [#allocation9], 128, 128, 8
    $region9: #{tpu_custom_call.1} parent=1 // pred_fallthru
      _
    // Predicated region
    $region10: #{tpu_custom_call.1} parent=1 // pred_check
      _
    $region11: #{tpu_custom_call.1} parent=1 // pred_check_branch
      %35 = sbr.rel (0) target = $region13
    $region12: #{tpu_custom_call.1} parent=1 // pred_region
      %36 = dma.done [#allocation6], 256
    $region13: #{tpu_custom_call.1} parent=1 // pred_fallthru
      _
    // Predicated region
    $region14: #{tpu_custom_call.1} parent=1 // pred_check
      _
    $region15: #{tpu_custom_call.1} parent=1 // pred_check_branch
      %38 = sbr.rel (0) target = $region17
    $region16: #{tpu_custom_call.1} parent=1 // pred_region
      %39 = dma.done [#allocation9], 256
    $region17: #{tpu_custom_call.1} parent=1 // pred_fallthru
      _
    %p40 = scmp.eq.s32.totalorder 0, 0
    // Predicated region
    $region18: #{tpu_custom_call.1} parent=1 // pred_check
      %p41 = pneg %p40
    $region19: #{tpu_custom_call.1} parent=1 // pred_check_branch
      %43 = sbr.rel (%p41) target = $region21
    $region20: #{tpu_custom_call.1} parent=1 // pred_region
      %vm44 = vcmask 58368
      %45 = vst.msk [vmem:[#allocation2] sm:$0x3] %vm44, -142.85715
      %46 = vst.msk [vmem:[#allocation3] sm:$0x3] %vm44, 1.0
    $region21: #{tpu_custom_call.1} parent=1 // pred_fallthru
      _
    %v47 = vld [vmem:[#allocation5] sm:$0xff]
    %v48 = vld [vmem:[#allocation5 + $0x8] sm:$0xff]
    %v49 = vmul.f32 %v47, 14.285714
    %v50 = vmul.f32 %v48, 14.285714
    %v51 = vld [vmem:[#allocation8] sm:$0xff]
    %v52 = vld [vmem:[#allocation8 + $0x8] sm:$0xff]
    %vm53 = vcmask 261120
    %v55 = vsel %vm53, %v49, 0
    %v58 = vsel %vm53, %v51, 0
    %60 = vmatprep.subr.mxu0 0.0
    %61 = vmatpush1.xpose.msra.mxu0 %v58
    %62 = vmatprep.subr.mxu0 0.0
    %63 = vmatpush1.xpose.msra.mxu0 0.0
    %64 = vmatprep.subr.mxu0 0.0
    %65 = vmatpush1.xpose.msra.mxu0 0.0
    %66 = vmatprep.subr.mxu0 0.0
    %67 = vmatpush1.xpose.msra.mxu0 0.0
    %68 = vmatprep.subr.mxu0 0.0
    %69 = vmatpush1.xpose.msra.mxu0 0.0
    %70 = vmatprep.subr.mxu0 0.0
    %71 = vmatpush1.xpose.msra.mxu0 0.0
    %72 = vmatprep.subr.mxu0 0.0
    %73 = vmatpush1.xpose.msra.mxu0 0.0
    %74 = vmatprep.subr.mxu0 0.0
    %75 = vmatpush1.xpose.msra.mxu0 0.0
    %76 = vmatprep.subr.mxu0 0.0
    %77 = vmatpush1.xpose.msra.mxu0 0.0
    %78 = vmatprep.subr.mxu0 0.0
    %79 = vmatpush1.xpose.msra.mxu0 0.0
    %80 = vmatprep.subr.mxu0 0.0
    %81 = vmatpush1.xpose.msra.mxu0 0.0
    %82 = vmatprep.subr.mxu0 0.0
    %83 = vmatpush1.xpose.msra.mxu0 0.0
    %84 = vmatprep.subr.mxu0 0.0
    %85 = vmatpush1.xpose.msra.mxu0 0.0
    %86 = vmatprep.subr.mxu0 0.0
    %87 = vmatpush1.xpose.msra.mxu0 0.0
    %88 = vmatprep.subr.mxu0 0.0
    %89 = vmatpush1.xpose.msra.mxu0 0.0
    %90 = vmatprep.subr.mxu0 0.0
    %91 = vmatpush1.xpose.msra.mxu0 0.0
    %92 = vmatprep.subr.mxu0 0.0
    %93 = vmatpush1.xpose.msra.mxu0 0.0
    %94 = vmatprep.subr.mxu0 0.0
    %95 = vmatpush1.xpose.msra.mxu0 0.0
    %96 = vmatprep.subr.mxu0 0.0
    %97 = vmatpush1.xpose.msra.mxu0 0.0
    %98 = vmatprep.subr.mxu0 0.0
    %99 = vmatpush1.xpose.msra.mxu0 0.0
    %100 = vmatprep.subr.mxu0 0.0
    %101 = vmatpush1.xpose.msra.mxu0 0.0
    %102 = vmatprep.subr.mxu0 0.0
    %103 = vmatpush1.xpose.msra.mxu0 0.0
    %104 = vmatprep.subr.mxu0 0.0
    %105 = vmatpush1.xpose.msra.mxu0 0.0
    %106 = vmatprep.subr.mxu0 0.0
    %107 = vmatpush1.xpose.msra.mxu0 0.0
    %108 = vmatprep.subr.mxu0 0.0
    %109 = vmatpush1.xpose.msra.mxu0 0.0
    %110 = vmatprep.subr.mxu0 0.0
    %111 = vmatpush1.xpose.msra.mxu0 0.0
    %112 = vmatprep.subr.mxu0 0.0
    %113 = vmatpush1.xpose.msra.mxu0 0.0
    %114 = vmatprep.subr.mxu0 0.0
    %115 = vmatpush1.xpose.msra.mxu0 0.0
    %116 = vmatprep.subr.mxu0 0.0
    %117 = vmatpush1.xpose.msra.mxu0 0.0
    %118 = vmatprep.subr.mxu0 0.0
    %119 = vmatpush1.xpose.msra.mxu0 0.0
    %120 = vmatprep.subr.mxu0 0.0
    %121 = vmatpush1.xpose.msra.mxu0 0.0
    %122 = vmatprep.subr.mxu0 0.0
    %123 = vmatpush1.xpose.msra.mxu0 0.0
    %124 = vmatprep.mubr.f32.mxu0 0.0
    %125 = vmatmul.mubr.f32.gmra.mrb[0].mxu0 %v55
    %v126 = vpop.f32.mrb[0].mxu0
    %v127 = vadd.f32 0.0, %v126
    %v128 = vpop.f32.mrb[0].mxu0
    %129 = vdwg.mxu0
    %v131 = vsel %vm53, %v50, 0
    %v134 = vsel %vm53, %v52, 0
    %136 = vmatprep.subr.mxu0 0.0
    %137 = vmatpush1.xpose.msra.mxu0 %v134
    %138 = vmatprep.subr.mxu0 0.0
    %139 = vmatpush1.xpose.msra.mxu0 0.0
    %140 = vmatprep.subr.mxu0 0.0
    %141 = vmatpush1.xpose.msra.mxu0 0.0
    %142 = vmatprep.subr.mxu0 0.0
    %143 = vmatpush1.xpose.msra.mxu0 0.0
    %144 = vmatprep.subr.mxu0 0.0
    %145 = vmatpush1.xpose.msra.mxu0 0.0
    %146 = vmatprep.subr.mxu0 0.0
    %147 = vmatpush1.xpose.msra.mxu0 0.0
    %148 = vmatprep.subr.mxu0 0.0
    %149 = vmatpush1.xpose.msra.mxu0 0.0
    %150 = vmatprep.subr.mxu0 0.0
    %151 = vmatpush1.xpose.msra.mxu0 0.0
    %152 = vmatprep.subr.mxu0 0.0
    %153 = vmatpush1.xpose.msra.mxu0 0.0
    %154 = vmatprep.subr.mxu0 0.0
    %155 = vmatpush1.xpose.msra.mxu0 0.0
    %156 = vmatprep.subr.mxu0 0.0
    %157 = vmatpush1.xpose.msra.mxu0 0.0
    %158 = vmatprep.subr.mxu0 0.0
    %159 = vmatpush1.xpose.msra.mxu0 0.0
    %160 = vmatprep.subr.mxu0 0.0
    %161 = vmatpush1.xpose.msra.mxu0 0.0
    %162 = vmatprep.subr.mxu0 0.0
    %163 = vmatpush1.xpose.msra.mxu0 0.0
    %164 = vmatprep.subr.mxu0 0.0
    %165 = vmatpush1.xpose.msra.mxu0 0.0
    %166 = vmatprep.subr.mxu0 0.0
    %167 = vmatpush1.xpose.msra.mxu0 0.0
    %168 = vmatprep.subr.mxu0 0.0
    %169 = vmatpush1.xpose.msra.mxu0 0.0
    %170 = vmatprep.subr.mxu0 0.0
    %171 = vmatpush1.xpose.msra.mxu0 0.0
    %172 = vmatprep.subr.mxu0 0.0
    %173 = vmatpush1.xpose.msra.mxu0 0.0
    %174 = vmatprep.subr.mxu0 0.0
    %175 = vmatpush1.xpose.msra.mxu0 0.0
    %176 = vmatprep.subr.mxu0 0.0
    %177 = vmatpush1.xpose.msra.mxu0 0.0
    %178 = vmatprep.subr.mxu0 0.0
    %179 = vmatpush1.xpose.msra.mxu0 0.0
    %180 = vmatprep.subr.mxu0 0.0
    %181 = vmatpush1.xpose.msra.mxu0 0.0
    %182 = vmatprep.subr.mxu0 0.0
    %183 = vmatpush1.xpose.msra.mxu0 0.0
    %184 = vmatprep.subr.mxu0 0.0
    %185 = vmatpush1.xpose.msra.mxu0 0.0
    %186 = vmatprep.subr.mxu0 0.0
    %187 = vmatpush1.xpose.msra.mxu0 0.0
    %188 = vmatprep.subr.mxu0 0.0
    %189 = vmatpush1.xpose.msra.mxu0 0.0
    %190 = vmatprep.subr.mxu0 0.0
    %191 = vmatpush1.xpose.msra.mxu0 0.0
    %192 = vmatprep.subr.mxu0 0.0
    %193 = vmatpush1.xpose.msra.mxu0 0.0
    %194 = vmatprep.subr.mxu0 0.0
    %195 = vmatpush1.xpose.msra.mxu0 0.0
    %196 = vmatprep.subr.mxu0 0.0
    %197 = vmatpush1.xpose.msra.mxu0 0.0
    %198 = vmatprep.subr.mxu0 0.0
    %199 = vmatpush1.xpose.msra.mxu0 0.0
    %200 = vmatprep.mubr.f32.mxu0 0.0
    %201 = vmatmul.mubr.f32.gmra.mrb[0].mxu0 %v131
    %v202 = vpop.f32.mrb[0].mxu0
    %v203 = vadd.f32 0.0, %v202
    %v204 = vpop.f32.mrb[0].mxu0
    %205 = vdwg.mxu0
    %p206 = scmp.eq.s32.totalorder 0, 0
    // Predicated region
    $region22: #{tpu_custom_call.1} parent=1 // pred_check
      %p207 = pneg %p206
    $region23: #{tpu_custom_call.1} parent=1 // pred_check_branch
      %209 = sbr.rel (%p207) target = $region25
    $region24: #{tpu_custom_call.1} parent=1 // pred_region
      %v210 = vmul.f32 %v49, %v51
      %v211 = vmul.f32 %v50, %v52
      %v212 = vsel %vm53, %v210, 0.0
      %213 = vadd.xlane.f32.xlu0 %v212
      %v214 = vpop.xlane.xlu0 %213
      %v215 = vsel %vm53, %v211, 0.0
      %216 = vadd.xlane.f32.xlu0 %v215
      %v217 = vpop.xlane.xlu0 %216
      %v220 = vlaneseq
      %v221 = vand.u32 %v220, 127
      %v222 = vlaneseq
      %v223 = vshrl.u32 %v222, 7
      %v224 = vsub.s32 %v221, %v223
      %v225 = vrot.slane %v214, %v224
      %v226 = vlaneseq
      %v227 = vshrl.u32 %v226, 7
      %v228 = vsub.s32 %v221, %v227
      %v229 = vrot.slane %v217, %v228
      %vm230 = vcmask 1041409
      %v231 = vsel %vm230, %v229, %v225
      %vm233 = vcmask 58368
      %234 = vst.msk [vmem:[#allocation4] sm:$0x3] %vm233, %v231
    $region25: #{tpu_custom_call.1} parent=1 // pred_fallthru
      _
    %v235 = vld [vmem:[#allocation2] sm:$0x3]
    %vm236 = vcmask 64512
    %v237 = vsel %vm236, %v127, -inf
    %238 = vmax.xlane.f32.xlu0 %v237
    %v239 = vpop.xlane.xlu0 %238
    %v240 = vsel %vm236, %v203, -inf
    %241 = vmax.xlane.f32.xlu0 %v240
    %v242 = vpop.xlane.xlu0 %241
    %v245 = vlaneseq
    %v246 = vand.u32 %v245, 127
    %v247 = vlaneseq
    %v248 = vshrl.u32 %v247, 7
    %v249 = vsub.s32 %v246, %v248
    %v250 = vrot.slane %v239, %v249
    %v251 = vlaneseq
    %v252 = vshrl.u32 %v251, 7
    %v253 = vsub.s32 %v246, %v252
    %v254 = vrot.slane %v242, %v253
    %vm255 = vcmask 1041409
    %v256 = vsel %vm255, %v254, %v250
    %v258 = vmax.f32 %v235, %v256
    %v259 = vlaneseq
    %v260 = vshrl.u32 %v259, 7
    %v261 = vsub.s32 0, %v260
    %v262 = vrot.slane %v258, %v261
    %264 = vbcast.lane.b32.xlu0 %v262, 256
    %v265 = vpop.permute.xlu0 %264
    %v266 = vlaneseq
    %v267 = vshrl.u32 %v266, 7
    %v268 = vsub.s32 1, %v267
    %v269 = vrot.slane %v258, %v268
    %271 = vbcast.lane.b32.xlu0 %v269, 256
    %v272 = vpop.permute.xlu0 %271
    %v273 = vsub.f32 %v127, %v265
    %v274 = vsub.f32 %v203, %v272
    %v275 = vmul.f32 %v273, 1.442695
    %v276 = vpow.pop %v275
    %v277 = vmul.f32 %v274, 1.442695
    %v278 = vpow.pop %v277
    %v279 = vsel %vm236, %v276, 0.0
    %280 = vadd.xlane.f32.xlu0 %v279
    %v281 = vpop.xlane.xlu0 %280
    %v282 = vsel %vm236, %v278, 0.0
    %283 = vadd.xlane.f32.xlu0 %v282
    %v284 = vpop.xlane.xlu0 %283
    %v285 = vsub.f32 %v235, %v258
    %v286 = vmul.f32 %v285, 1.442695
    %v287 = vpow.pop %v286
    %v288 = vld [vmem:[#allocation3] sm:$0x3]
    %v289 = vmul.f32 %v287, %v288
    %v292 = vlaneseq
    %v293 = vshrl.u32 %v292, 7
    %v294 = vsub.s32 %v246, %v293
    %v295 = vrot.slane %v281, %v294
    %v296 = vlaneseq
    %v297 = vshrl.u32 %v296, 7
    %v298 = vsub.s32 %v246, %v297
    %v299 = vrot.slane %v284, %v298
    %v300 = vsel %vm255, %v299, %v295
    %v302 = vadd.f32 %v289, %v300
    %vm303 = vcmask 58368
    %304 = vst.msk [vmem:[#allocation3] sm:$0x3] %vm303, %v302
    %305 = vst.msk [vmem:[#allocation2] sm:$0x3] %vm303, %v258
    // Predicated region
    $region26: #{tpu_custom_call.1} parent=1 // pred_check
      %p306 = pneg %p40
    $region27: #{tpu_custom_call.1} parent=1 // pred_check_branch
      %308 = sbr.rel (%p306) target = $region29
    $region28: #{tpu_custom_call.1} parent=1 // pred_region
      %v309 = vld [vmem:[#allocation2] sm:$0x3]
      %v310 = vld [vmem:[#allocation3] sm:$0x3]
      %v311 = vlog2.pop %v310
      %v312 = vmul.f32 %v311, 0.6931472
      %v313 = vadd.f32 %v309, %v312
      %v314 = vld [vmem:[#allocation4] sm:$0x3]
      %v315 = vsub.f32 %v313, %v314
      %316 = vst.msk [vmem:[#allocation10] sm:$0x3] %vm303, %v315
    $region29: #{tpu_custom_call.1} parent=1 // pred_fallthru
      _
    // Predicated region
    $region30: #{tpu_custom_call.1} parent=1 // pred_check
      _
    $region31: #{tpu_custom_call.1} parent=1 // pred_check_branch
      %318 = sbr.rel (0) target = $region33
    $region32: #{tpu_custom_call.1} parent=1 // pred_region
      %s320 = ssub.s32 32, 32
      %321 = vsyncadd [#allocation7], %s320
      %s323 = sshll.u32 [#allocation10], 4
      %s324 = int_to_ptr.vmem [resolvable:$true] %s323
      %326 = dma.vmem_to_hbm [thread:$0]  %s324, 32, %s2, [#allocation7]
    $region33: #{tpu_custom_call.1} parent=1 // pred_fallthru
      _
    // Predicated region
    $region34: #{tpu_custom_call.1} parent=1 // pred_check
      _
    $region35: #{tpu_custom_call.1} parent=1 // pred_check_branch
      %328 = sbr.rel (0) target = $region37
    $region36: #{tpu_custom_call.1} parent=1 // pred_region
      %329 = dma.done [#allocation7], 32
    $region37: #{tpu_custom_call.1} parent=1 // pred_fallthru
      _
    %330 = vsyncpa [#allocation6], 1
    %331 = vsyncpa [#allocation9], 1
    %332 = vsyncpa [#allocation7], 1

</llo_original>
